<compile_context>
chip_gen: v5e
topology: v5e:2x2
jax: 0.10.0
libtpu: 0.0.40
codegen_flags: <defaults>
</compile_context>

<pallas_src>
from typing import NamedTuple

import jax
import jax.numpy as jnp
from jax.experimental import pallas as pl
from jax.experimental.pallas import tpu as pltpu


def _round_up(x, m):
    return ((x + m - 1) // m) * m


# -----------------------------------------------------------------------------
# Kernel: one grid step pushes `tb` folded-batch rows through the whole MLP.
# -----------------------------------------------------------------------------
def encoder_kernel(x_ref, w1_ref, w2_ref, wmv_ref, b_ref, mean_ref, var_ref):
    fh0 = w1_ref.shape[1]        # fold * hidden_dim[0]
    fh1 = w2_ref.shape[1]        # fold * hidden_dim[1]
    two_fl = wmv_ref.shape[1]    # 2 * fold * latent_dim
    fl = two_fl // 2

    cdt = w1_ref.dtype           # MXU operand dtype (f32, or bf16 if use_bf16)
    x = x_ref[...].astype(cdt)   # x.float() in the PyTorch forward

    # e1 + relu (bias add + ReLU in f32)
    h1 = jnp.dot(x, w1_ref[...], preferred_element_type=jnp.float32)
    h1 = jnp.maximum(h1 + b_ref[0:1, 0:fh0], 0.0)

    # e2 + relu
    h2 = jnp.dot(h1.astype(cdt), w2_ref[...], preferred_element_type=jnp.float32)
    h2 = jnp.maximum(h2 + b_ref[1:2, 0:fh1], 0.0)

    # fused mu|var head: one matmul, then static split into two lane-dense outputs
    out = (jnp.dot(h2.astype(cdt), wmv_ref[...], preferred_element_type=jnp.float32)
           + b_ref[2:3, 0:two_fl])
    mean_ref[...] = out[:, 0:fl]
    var_ref[...] = out[:, fl:two_fl]


# -----------------------------------------------------------------------------
# One-time host-side parameter packing (hoisted out of the forward pass).
# -----------------------------------------------------------------------------
class EncoderParams(NamedTuple):
    w1p: jax.Array      # (fold*in_feat, fold*h0)   block-diagonal
    w2p: jax.Array      # (fold*h0,     fold*h1)    block-diagonal
    wmvp: jax.Array     # (fold*h1, 2*fold*latent)  [ mu block-diag | var block-diag ]
    b_all: jax.Array    # (3, max_w) packed f32 biases, each tiled `fold` times
    raw: tuple          # original (w1,b1,w2,b2,wm,bm,wv,bv) in f32 (XLA fallback)
    fold: int
    in_feat: int
    latent: int


def prepare_encoder_params(params, *, fold=8, use_bf16=False):
    """Pack Encoder weights for the Pallas kernel (call once, reuse every step).

    fold:     batch rows folded into the lane dimension. 8 on v6e/v7x
              (K = fold*32 = 256), 4 on v5e (K = 128).
    use_bf16: cast matmul operands to bf16 (f32 accumulation). Keep False for
              exact parity with the f32 PyTorch reference (v6e/v7x-only win).
    """
    w1, b1, w2, b2, wm, bm, wv, bv = [p.astype(jnp.float32) for p in params]
    in_feat = w1.shape[0]
    latent = wm.shape[1]

    eye = jnp.eye(fold, dtype=jnp.float32)
    w1p = jnp.kron(eye, w1)
    w2p = jnp.kron(eye, w2)
    wmvp = jnp.concatenate([jnp.kron(eye, wm), jnp.kron(eye, wv)], axis=1)

    b1p = jnp.tile(b1.reshape(1, -1), (1, fold))
    b2p = jnp.tile(b2.reshape(1, -1), (1, fold))
    bmvp = jnp.concatenate([jnp.tile(bm.reshape(1, -1), (1, fold)),
                            jnp.tile(bv.reshape(1, -1), (1, fold))], axis=1)
    max_w = max(b1p.shape[1], b2p.shape[1], bmvp.shape[1])

    def _pad_row(b):
        return jnp.pad(b, ((0, 0), (0, max_w - b.shape[1])))

    b_all = jnp.concatenate([_pad_row(b1p), _pad_row(b2p), _pad_row(bmvp)], axis=0)

    cdt = jnp.bfloat16 if use_bf16 else jnp.float32
    return EncoderParams(w1p.astype(cdt), w2p.astype(cdt), wmvp.astype(cdt),
                         b_all, (w1, b1, w2, b2, wm, bm, wv, bv),
                         fold, in_feat, latent)


def _encoder_forward_xla(x, raw):
    w1, b1, w2, b2, wm, bm, wv, bv = raw
    x = x.astype(jnp.float32)
    h1 = jnp.maximum(x @ w1 + b1, 0.0)
    h2 = jnp.maximum(h1 @ w2 + b2, 0.0)
    return h2 @ wm + bm, h2 @ wv + bv


# -----------------------------------------------------------------------------
# Forward pass.
# -----------------------------------------------------------------------------
def encoder_forward(x, prep: EncoderParams, *, max_tile_rows=4096,
                    xla_fallback_below=0):
    """x: (B, input_dim + 8). Returns (mean, log_var), each (B, latent)."""
    B = x.shape[0]
    fold, in_feat, latent = prep.fold, prep.in_feat, prep.latent
    assert x.shape[1] == in_feat

    if B < xla_fallback_below:
        # pallas_call launch overhead dominates at tiny B; plain fused XLA wins.
        return _encoder_forward_xla(x, prep.raw)

    cdt = prep.w1p.dtype
    fF = fold * in_feat
    fl = fold * latent

    # ---- batch tiling in the *folded* row space ----
    bf = -(-B // fold)                                 # folded rows needed
    cap_f = max(8, max_tile_rows // fold)
    if bf > 8:
        # >= 2 grid steps when possible so v7x's 2 TensorCores both get work.
        tb = min(cap_f, _round_up(-(-bf // 2), 8))
    else:
        tb = 8
    bf_pad = _round_up(bf, tb)
    b_pad = bf_pad * fold
    grid = (bf_pad // tb,)

    xf = x.astype(cdt)                                 # cast upstream: HBM read shrinks in bf16 mode
    if b_pad != B:
        xf = jnp.pad(xf, ((0, b_pad - B), (0, 0)))
    xf = xf.reshape(bf_pad, fF)                        # fold rows into lanes (free, row-major)

    itemsize = jnp.dtype(cdt).itemsize
    flops = 2 * bf_pad * (fF * prep.w1p.shape[1]
                          + prep.w1p.shape[1] * prep.w2p.shape[1]
                          + prep.w2p.shape[1] * prep.wmvp.shape[1])
    bytes_accessed = int(xf.size * itemsize
                         + (prep.w1p.size + prep.w2p.size + prep.wmvp.size) * itemsize
                         + prep.b_all.size * 4
                         + 2 * bf_pad * fl * 4)

    # Explicit VMEM budget (v5e scoped default is only 16 MiB): streamed tiles
    # are double-buffered, weights stay resident.
    tile_bytes = 2 * (tb * fF * itemsize + 2 * tb * fl * 4)
    weight_bytes = 2 * ((prep.w1p.size + prep.w2p.size + prep.wmvp.size) * itemsize
                        + prep.b_all.size * 4)
    vmem_limit = int(min(max(2 * (tile_bytes + weight_bytes), 16 << 20), 100 << 20))

    mean_f, var_f = pl.pallas_call(
        encoder_kernel,
        out_shape=(jax.ShapeDtypeStruct((bf_pad, fl), jnp.float32),
                   jax.ShapeDtypeStruct((bf_pad, fl), jnp.float32)),
        grid=grid,
        in_specs=[
            pl.BlockSpec((tb, fF), lambda i: (i, 0)),           # streamed folded x
            pl.BlockSpec(prep.w1p.shape, lambda i: (0, 0)),     # resident weights
            pl.BlockSpec(prep.w2p.shape, lambda i: (0, 0)),
            pl.BlockSpec(prep.wmvp.shape, lambda i: (0, 0)),
            pl.BlockSpec(prep.b_all.shape, lambda i: (0, 0)),   # packed biases
        ],
        out_specs=(pl.BlockSpec((tb, fl), lambda i: (i, 0)),
                   pl.BlockSpec((tb, fl), lambda i: (i, 0))),
        compiler_params=pltpu.CompilerParams(
            dimension_semantics=("parallel",),
            vmem_limit_bytes=vmem_limit),
        cost_estimate=pl.CostEstimate(
            flops=flops, transcendentals=0, bytes_accessed=bytes_accessed),
    )(xf, prep.w1p, prep.w2p, prep.wmvp, prep.b_all)

    # Unfold: row r of mean_f holds [mu(x_{r*fold}) | ... | mu(x_{r*fold+fold-1})].
    mean = mean_f.reshape(b_pad, latent)[:B]
    log_var = var_f.reshape(b_pad, latent)[:B]
    return mean, log_var


# -----------------------------------------------------------------------------
# Synthetic init / reference.
# -----------------------------------------------------------------------------
def init_encoder_params(key, input_dim, hidden_dim, latent_dim):
    """Deterministic synthetic init. Weights stored (in, out); biases (1, out)."""
    in_features = input_dim + 8
    dims = [(in_features, hidden_dim[0]),
            (hidden_dim[0], hidden_dim[1]),
            (hidden_dim[1], latent_dim),
            (hidden_dim[1], latent_dim)]
    params = []
    for (din, dout) in dims:
        key, kw, kb = jax.random.split(key, 3)
        scale = 1.0 / jnp.sqrt(jnp.float32(din))
        w = jax.random.uniform(kw, (din, dout), jnp.float32, -scale, scale)
        b = jax.random.uniform(kb, (1, dout), jnp.float32, -scale, scale)
        params.extend([w, b])
    return tuple(params)


def encoder_reference(x, params):
    """Pure-JAX reference for correctness check."""
    return _encoder_forward_xla(x, params)


if __name__ == "__main__":
    # Shapes consistent with the module:
    #   input_dim=24 -> e1 input features = input_dim + 8 = 32
    #   hidden_dim=[64, 32], latent_dim=16
    input_dim = 24
    hidden_dim = [64, 32]
    latent_dim = 16

    key = jax.random.PRNGKey(0)
    params = init_encoder_params(key, input_dim, hidden_dim, latent_dim)
    prep = prepare_encoder_params(params, fold=8, use_bf16=False)
    # TODO(synk): fold=4 on v5e; use_bf16=True on v6e/v7x for large batches.

    ok = True
    for batch in (8, 1000):   # tiny batch + non-multiple-of-fold batch (padding + 2 grid steps)
        key, kx = jax.random.split(key)
        x = jax.random.normal(kx, (batch, input_dim + 8), dtype=jnp.float32)

        mean, log_var = encoder_forward(x, prep)
        jax.block_until_ready((mean, log_var))

        ref_mean, ref_logvar = encoder_reference(x, params)
        ok &= mean.shape == (batch, latent_dim)
        ok &= log_var.shape == (batch, latent_dim)
        ok &= bool(jnp.allclose(mean, ref_mean, atol=1e-5, rtol=1e-5))
        ok &= bool(jnp.allclose(log_var, ref_logvar, atol=1e-5, rtol=1e-5))

    assert ok
    print("KERNEL_OK")
</pallas_src>

<mosaic_0001>
module attributes {stable_mosaic.version = 11 : i64} {
  func.func @encoder_kernel(%arg0: i32, %arg1: memref<8x256xf32, #tpu.memory_space<vmem>>, %arg2: memref<256x512xf32, #tpu.memory_space<vmem>>, %arg3: memref<512x256xf32, #tpu.memory_space<vmem>>, %arg4: memref<256x256xf32, #tpu.memory_space<vmem>>, %arg5: memref<3x512xf32, #tpu.memory_space<vmem>>, %arg6: memref<8x128xf32, #tpu.memory_space<vmem>>, %arg7: memref<8x128xf32, #tpu.memory_space<vmem>>) attributes {dimension_semantics = [#tpu.dimension_semantics<parallel>], iteration_bounds = array<i64: 1>, scalar_prefetch = 0 : i64, scratch_operands = 0 : i64, tpu.core_type = #tpu.core_type<tc>, window_params = [{transform_indices = @transform_0, window_bounds = array<i64: 8, 256>}, {pipeline_mode = #tpu.pipeline_mode<synchronous>, transform_indices = @transform_1, window_bounds = array<i64: 256, 512>}, {pipeline_mode = #tpu.pipeline_mode<synchronous>, transform_indices = @transform_2, window_bounds = array<i64: 512, 256>}, {pipeline_mode = #tpu.pipeline_mode<synchronous>, transform_indices = @transform_3, window_bounds = array<i64: 256, 256>}, {pipeline_mode = #tpu.pipeline_mode<synchronous>, transform_indices = @transform_4, window_bounds = array<i64: 3, 512>}, {transform_indices = @transform_5, window_bounds = array<i64: 8, 128>}, {transform_indices = @transform_6, window_bounds = array<i64: 8, 128>}]} {
    %c0 = arith.constant 0 : index
    %c0_0 = arith.constant 0 : index
    %0 = vector.load %arg1[%c0, %c0_0] : memref<8x256xf32, #tpu.memory_space<vmem>>, vector<8x256xf32>
    %c0_1 = arith.constant 0 : index
    %c0_2 = arith.constant 0 : index
    %1 = vector.load %arg2[%c0_1, %c0_2] : memref<256x512xf32, #tpu.memory_space<vmem>>, vector<256x512xf32>
    %cst = arith.constant dense<0.000000e+00> : vector<8x512xf32>
    %2 = tpu.matmul %0, %1, %cst {dimension_numbers = #tpu.dot_dimension_numbers<[1], [0], [0], [1], [0, 0, 1, 1], [], []>} : vector<8x256xf32>, vector<256x512xf32>, vector<8x512xf32> -> vector<8x512xf32>
    %c0_3 = arith.constant 0 : index
    %c0_4 = arith.constant 0 : index
    %3 = vector.load %arg5[%c0_3, %c0_4] : memref<3x512xf32, #tpu.memory_space<vmem>>, vector<1x512xf32>
    %4 = vector.broadcast %3 : vector<1x512xf32> to vector<8x512xf32>
    %5 = arith.addf %2, %4 : vector<8x512xf32>
    %cst_5 = arith.constant 0.000000e+00 : f32
    %6 = vector.broadcast %cst_5 : f32 to vector<8x512xf32>
    %7 = arith.maximumf %5, %6 : vector<8x512xf32>
    %c0_6 = arith.constant 0 : index
    %c0_7 = arith.constant 0 : index
    %8 = vector.load %arg3[%c0_6, %c0_7] : memref<512x256xf32, #tpu.memory_space<vmem>>, vector<512x256xf32>
    %cst_8 = arith.constant dense<0.000000e+00> : vector<8x256xf32>
    %9 = tpu.matmul %7, %8, %cst_8 {dimension_numbers = #tpu.dot_dimension_numbers<[1], [0], [0], [1], [0, 0, 1, 1], [], []>} : vector<8x512xf32>, vector<512x256xf32>, vector<8x256xf32> -> vector<8x256xf32>
    %c1 = arith.constant 1 : index
    %c0_9 = arith.constant 0 : index
    %10 = vector.load %arg5[%c1, %c0_9] : memref<3x512xf32, #tpu.memory_space<vmem>>, vector<1x256xf32>
    %11 = vector.broadcast %10 : vector<1x256xf32> to vector<8x256xf32>
    %12 = arith.addf %9, %11 : vector<8x256xf32>
    %cst_10 = arith.constant 0.000000e+00 : f32
    %13 = vector.broadcast %cst_10 : f32 to vector<8x256xf32>
    %14 = arith.maximumf %12, %13 : vector<8x256xf32>
    %c0_11 = arith.constant 0 : index
    %c0_12 = arith.constant 0 : index
    %15 = vector.load %arg4[%c0_11, %c0_12] : memref<256x256xf32, #tpu.memory_space<vmem>>, vector<256x256xf32>
    %cst_13 = arith.constant dense<0.000000e+00> : vector<8x256xf32>
    %16 = tpu.matmul %14, %15, %cst_13 {dimension_numbers = #tpu.dot_dimension_numbers<[1], [0], [0], [1], [0, 0, 1, 1], [], []>} : vector<8x256xf32>, vector<256x256xf32>, vector<8x256xf32> -> vector<8x256xf32>
    %c2 = arith.constant 2 : index
    %c0_14 = arith.constant 0 : index
    %17 = vector.load %arg5[%c2, %c0_14] : memref<3x512xf32, #tpu.memory_space<vmem>>, vector<1x256xf32>
    %18 = vector.broadcast %17 : vector<1x256xf32> to vector<8x256xf32>
    %19 = arith.addf %16, %18 : vector<8x256xf32>
    %20 = vector.extract_strided_slice %19 {offsets = [0, 0], sizes = [8, 128], strides = [1, 1]} : vector<8x256xf32> to vector<8x128xf32>
    %c0_15 = arith.constant 0 : index
    %c0_16 = arith.constant 0 : index
    %21 = vector.load %arg6[%c0_15, %c0_16] : memref<8x128xf32, #tpu.memory_space<vmem>>, vector<8x128xf32>
    tpu.vector_store %arg6[%c0_15, %c0_16], %20 {strides = array<i32>} : memref<8x128xf32, #tpu.memory_space<vmem>>, vector<8x128xf32>,
    %22 = vector.extract_strided_slice %19 {offsets = [0, 128], sizes = [8, 128], strides = [1, 1]} : vector<8x256xf32> to vector<8x128xf32>
    %c0_17 = arith.constant 0 : index
    %c0_18 = arith.constant 0 : index
    %23 = vector.load %arg7[%c0_17, %c0_18] : memref<8x128xf32, #tpu.memory_space<vmem>>, vector<8x128xf32>
    tpu.vector_store %arg7[%c0_17, %c0_18], %22 {strides = array<i32>} : memref<8x128xf32, #tpu.memory_space<vmem>>, vector<8x128xf32>,
    return
  }
  func.func @transform_0(%arg0: i32) -> (i32, i32) {
    %c0_i32 = arith.constant 0 : i32
    %c0_i32_0 = arith.constant 0 : i32
    return %arg0, %c0_i32 : i32, i32
  }
  func.func @transform_1(%arg0: i32) -> (i32, i32) {
    %c0_i32 = arith.constant 0 : i32
    %c0_i32_0 = arith.constant 0 : i32
    %c0_i32_1 = arith.constant 0 : i32
    return %c0_i32, %c0_i32_0 : i32, i32
  }
  func.func @transform_2(%arg0: i32) -> (i32, i32) {
    %c0_i32 = arith.constant 0 : i32
    %c0_i32_0 = arith.constant 0 : i32
    %c0_i32_1 = arith.constant 0 : i32
    return %c0_i32, %c0_i32_0 : i32, i32
  }
  func.func @transform_3(%arg0: i32) -> (i32, i32) {
    %c0_i32 = arith.constant 0 : i32
    %c0_i32_0 = arith.constant 0 : i32
    %c0_i32_1 = arith.constant 0 : i32
    return %c0_i32, %c0_i32_0 : i32, i32
  }
  func.func @transform_4(%arg0: i32) -> (i32, i32) {
    %c0_i32 = arith.constant 0 : i32
    %c0_i32_0 = arith.constant 0 : i32
    %c0_i32_1 = arith.constant 0 : i32
    return %c0_i32, %c0_i32_0 : i32, i32
  }
  func.func @transform_5(%arg0: i32) -> (i32, i32) {
    %c0_i32 = arith.constant 0 : i32
    %c0_i32_0 = arith.constant 0 : i32
    return %arg0, %c0_i32 : i32, i32
  }
  func.func @transform_6(%arg0: i32) -> (i32, i32) {
    %c0_i32 = arith.constant 0 : i32
    %c0_i32_0 = arith.constant 0 : i32
    return %arg0, %c0_i32 : i32, i32
  }
}

</mosaic_0001>

<llo_original>
// kernel: tpu_custom_call.1
$region0: #{tpu_custom_call.1}
  #allocation0 [shape = 'u32[]', space=smem, size = 0x4, offset = 0x4, fixed_abs, tag = 'smem constant byte address 0x4 - core index']
  #allocation1 [shape = 'u32[72,128]{1,0:T(1,128)}', space=vmem, size = 0x9000, scoped, tag = 'internal scratch']
  %s0 = inlined_call_operand.hbm [shape: f32[8,256], index: 0, kind: input, shape index: {}]
  %s1 = inlined_call_operand.hbm [shape: f32[256,512], index: 1, kind: input, shape index: {}]
  %s2 = inlined_call_operand.hbm [shape: f32[512,256], index: 2, kind: input, shape index: {}]
  %s3 = inlined_call_operand.hbm [shape: f32[256,256], index: 3, kind: input, shape index: {}]
  %s4 = inlined_call_operand.hbm [shape: f32[3,512], index: 4, kind: input, shape index: {}]
  %s5 = inlined_call_operand.hbm [shape: f32[8,128], index: 5, kind: output, shape index: {0}]
  %s6 = inlined_call_operand.hbm [shape: f32[8,128], index: 6, kind: output, shape index: {1}]
  %7 = xla_tuple %s5, %s6
  %s8 = sld [smem:[#allocation0]]
  $region58: #{tpu_custom_call.1} parent=0
    _
  %s10 = ssub.s32 1, %s8
  %s11 = scalar_select 0, %s10, %s8
  $region1: #{tpu_custom_call.1} parent=0
    #allocation2 [shape = 'u8[8192]{0}', space=vmem, size = 0x2000, scoped, tag = 'input window, operand 0, single buffered']
    #allocation3 [shape = 's32[1]{0}', space=sflag, size = 0x4, scoped, tag = 'scoped memory for tpu_custom_call.1']
    #allocation4 [shape = 's32[1]{0}', space=sflag, size = 0x4, scoped, tag = 'scoped memory for tpu_custom_call.1']
    #allocation5 [shape = 'u8[524288]{0}', space=vmem, size = 0x80000, scoped, tag = 'input window, operand 1, single buffered']
    #allocation6 [shape = 's32[1]{0}', space=sflag, size = 0x4, scoped, tag = 'scoped memory for tpu_custom_call.1']
    #allocation7 [shape = 'u8[524288]{0}', space=vmem, size = 0x80000, scoped, tag = 'input window, operand 2, single buffered']
    #allocation8 [shape = 'u8[262144]{0}', space=vmem, size = 0x40000, scoped, tag = 'input window, operand 3, single buffered']
    #allocation9 [shape = 's32[1]{0}', space=sflag, size = 0x4, scoped, tag = 'scoped memory for tpu_custom_call.1']
    #allocation10 [shape = 'u8[8192]{0}', space=vmem, size = 0x2000, scoped, tag = 'input window, operand 4, single buffered']
    #allocation11 [shape = 'u8[4096]{0}', space=vmem, size = 0x1000, scoped, tag = 'output window, operand 0, single buffered']
    #allocation12 [shape = 'u8[4096]{0}', space=vmem, size = 0x1000, scoped, tag = 'output window, operand 1, single buffered']
    #allocation13 [shape = 's32[1]{0}', space=sflag, size = 0x4, scoped, tag = 'scoped memory for tpu_custom_call.1']
    %12 = vsyncpa [#allocation3], 0
    %13 = vsyncpa [#allocation6], 0
    %14 = vsyncpa [#allocation9], 0
    %15 = vsyncpa [#allocation4], 0
    %16 = vsyncpa [#allocation13], 0
    // Predicated region
    $region2: #{tpu_custom_call.1} parent=1 // pred_check
      _
    $region3: #{tpu_custom_call.1} parent=1 // pred_check_branch
      %18 = sbr.rel (0) target = $region5
    $region4: #{tpu_custom_call.1} parent=1 // pred_region
      %20 = vsyncadd [#allocation3], 0
      %s22 = sshll.u32 %s0, 4
      %s23 = int_to_ptr.hbm [resolvable:$true] %s22
      %s24 = sshll.u32 [#allocation2], 4
      %s25 = int_to_ptr.vmem [resolvable:$true] %s24
      %27 = dma.hbm_to_vmem [thread:$0]  %s23, 256, %s25, [#allocation3]
    $region5: #{tpu_custom_call.1} parent=1 // pred_fallthru
      _
    // Predicated region
    $region6: #{tpu_custom_call.1} parent=1 // pred_check
      _
    $region7: #{tpu_custom_call.1} parent=1 // pred_check_branch
      %29 = sbr.rel (0) target = $region9
    $region8: #{tpu_custom_call.1} parent=1 // pred_region
      %31 = vsyncadd [#allocation6], 0
      %s32 = sshll.u32 %s1, 4
      %s33 = int_to_ptr.hbm [resolvable:$true] %s32
      %s34 = sshll.u32 [#allocation5], 4
      %s35 = int_to_ptr.vmem [resolvable:$true] %s34
      %40 = dma.hbm_to_vmem [thread:$0]  %s33, 16384, %s35, [#allocation6], 512, 512, 32
    $region9: #{tpu_custom_call.1} parent=1 // pred_fallthru
      _
    // Predicated region
    $region10: #{tpu_custom_call.1} parent=1 // pred_check
      _
    $region11: #{tpu_custom_call.1} parent=1 // pred_check_branch
      %42 = sbr.rel (0) target = $region13
    $region12: #{tpu_custom_call.1} parent=1 // pred_region
      %44 = vsyncadd [#allocation6], 0
      %s45 = sshll.u32 %s2, 4
      %s46 = int_to_ptr.hbm [resolvable:$true] %s45
      %s47 = sshll.u32 [#allocation7], 4
      %s48 = int_to_ptr.vmem [resolvable:$true] %s47
      %53 = dma.hbm_to_vmem [thread:$0]  %s46, 16384, %s48, [#allocation6], 256, 256, 16
    $region13: #{tpu_custom_call.1} parent=1 // pred_fallthru
      _
    // Predicated region
    $region14: #{tpu_custom_call.1} parent=1 // pred_check
      _
    $region15: #{tpu_custom_call.1} parent=1 // pred_check_branch
      %55 = sbr.rel (0) target = $region17
    $region16: #{tpu_custom_call.1} parent=1 // pred_region
      %57 = vsyncadd [#allocation9], 0
      %s58 = sshll.u32 %s3, 4
      %s59 = int_to_ptr.hbm [resolvable:$true] %s58
      %s60 = sshll.u32 [#allocation8], 4
      %s61 = int_to_ptr.vmem [resolvable:$true] %s60
      %66 = dma.hbm_to_vmem [thread:$0]  %s59, 8192, %s61, [#allocation9], 256, 256, 16
    $region17: #{tpu_custom_call.1} parent=1 // pred_fallthru
      _
    // Predicated region
    $region18: #{tpu_custom_call.1} parent=1 // pred_check
      _
    $region19: #{tpu_custom_call.1} parent=1 // pred_check_branch
      %68 = sbr.rel (0) target = $region21
    $region20: #{tpu_custom_call.1} parent=1 // pred_region
      %70 = vsyncadd [#allocation9], 0
      %s72 = sshll.u32 %s4, 4
      %s73 = int_to_ptr.hbm [resolvable:$true] %s72
      %s74 = sshll.u32 [#allocation10], 4
      %s75 = int_to_ptr.vmem [resolvable:$true] %s74
      %77 = dma.hbm_to_vmem [thread:$0]  %s73, 256, %s75, [#allocation9]
    $region21: #{tpu_custom_call.1} parent=1 // pred_fallthru
      _
    // Predicated region
    $region22: #{tpu_custom_call.1} parent=1 // pred_check
      _
    $region23: #{tpu_custom_call.1} parent=1 // pred_check_branch
      %79 = sbr.rel (0) target = $region25
    $region24: #{tpu_custom_call.1} parent=1 // pred_region
      %81 = dma.done [#allocation3], 256
    $region25: #{tpu_custom_call.1} parent=1 // pred_fallthru
      _
    // Predicated region
    $region26: #{tpu_custom_call.1} parent=1 // pred_check
      _
    $region27: #{tpu_custom_call.1} parent=1 // pred_check_branch
      %83 = sbr.rel (0) target = $region29
    $region28: #{tpu_custom_call.1} parent=1 // pred_region
      %85 = dma.done [#allocation6], 16384
    $region29: #{tpu_custom_call.1} parent=1 // pred_fallthru
      _
    // Predicated region
    $region30: #{tpu_custom_call.1} parent=1 // pred_check
      _
    $region31: #{tpu_custom_call.1} parent=1 // pred_check_branch
      %87 = sbr.rel (0) target = $region33
    $region32: #{tpu_custom_call.1} parent=1 // pred_region
      %89 = dma.done [#allocation6], 16384
    $region33: #{tpu_custom_call.1} parent=1 // pred_fallthru
      _
    // Predicated region
    $region34: #{tpu_custom_call.1} parent=1 // pred_check
      _
    $region35: #{tpu_custom_call.1} parent=1 // pred_check_branch
      %91 = sbr.rel (0) target = $region37
    $region36: #{tpu_custom_call.1} parent=1 // pred_region
      %93 = dma.done [#allocation9], 8192
    $region37: #{tpu_custom_call.1} parent=1 // pred_fallthru
      _
    // Predicated region
    $region38: #{tpu_custom_call.1} parent=1 // pred_check
      _
    $region39: #{tpu_custom_call.1} parent=1 // pred_check_branch
      %95 = sbr.rel (0) target = $region41
    $region40: #{tpu_custom_call.1} parent=1 // pred_region
      %97 = dma.done [#allocation9], 256
    $region41: #{tpu_custom_call.1} parent=1 // pred_fallthru
      _
    %v98 = vld [vmem:[#allocation2] sm:$0xff]
    %v99 = vld [vmem:[#allocation2 + $0x8] sm:$0xff]
    %v100 = vld [vmem:[#allocation5] sm:$0xff]
    %v101 = vld [vmem:[#allocation5 + $0x8] sm:$0xff]
    %v102 = vld [vmem:[#allocation5 + $0x10] sm:$0xff]
    %v103 = vld [vmem:[#allocation5 + $0x18] sm:$0xff]
    %v104 = vld [vmem:[#allocation5 + $0x20] sm:$0xff]
    %v105 = vld [vmem:[#allocation5 + $0x28] sm:$0xff]
    %v106 = vld [vmem:[#allocation5 + $0x30] sm:$0xff]
    %v107 = vld [vmem:[#allocation5 + $0x38] sm:$0xff]
    %v108 = vld [vmem:[#allocation5 + $0x40] sm:$0xff]
    %v109 = vld [vmem:[#allocation5 + $0x48] sm:$0xff]
    %v110 = vld [vmem:[#allocation5 + $0x50] sm:$0xff]
    %v111 = vld [vmem:[#allocation5 + $0x58] sm:$0xff]
    %v112 = vld [vmem:[#allocation5 + $0x60] sm:$0xff]
    %v113 = vld [vmem:[#allocation5 + $0x68] sm:$0xff]
    %v114 = vld [vmem:[#allocation5 + $0x70] sm:$0xff]
    %v115 = vld [vmem:[#allocation5 + $0x78] sm:$0xff]
    %v116 = vld [vmem:[#allocation5 + $0x80] sm:$0xff]
    %v117 = vld [vmem:[#allocation5 + $0x88] sm:$0xff]
    %v118 = vld [vmem:[#allocation5 + $0x90] sm:$0xff]
    %v119 = vld [vmem:[#allocation5 + $0x98] sm:$0xff]
    %v120 = vld [vmem:[#allocation5 + $0xa0] sm:$0xff]
    %v121 = vld [vmem:[#allocation5 + $0xa8] sm:$0xff]
    %v122 = vld [vmem:[#allocation5 + $0xb0] sm:$0xff]
    %v123 = vld [vmem:[#allocation5 + $0xb8] sm:$0xff]
    %v124 = vld [vmem:[#allocation5 + $0xc0] sm:$0xff]
    %v125 = vld [vmem:[#allocation5 + $0xc8] sm:$0xff]
    %v126 = vld [vmem:[#allocation5 + $0xd0] sm:$0xff]
    %v127 = vld [vmem:[#allocation5 + $0xd8] sm:$0xff]
    %v128 = vld [vmem:[#allocation5 + $0xe0] sm:$0xff]
    %v129 = vld [vmem:[#allocation5 + $0xe8] sm:$0xff]
    %v130 = vld [vmem:[#allocation5 + $0xf0] sm:$0xff]
    %v131 = vld [vmem:[#allocation5 + $0xf8] sm:$0xff]
    %v132 = vld [vmem:[#allocation5 + $0x100] sm:$0xff]
    %v133 = vld [vmem:[#allocation5 + $0x108] sm:$0xff]
    %v134 = vld [vmem:[#allocation5 + $0x110] sm:$0xff]
    %v135 = vld [vmem:[#allocation5 + $0x118] sm:$0xff]
    %v136 = vld [vmem:[#allocation5 + $0x120] sm:$0xff]
    %v137 = vld [vmem:[#allocation5 + $0x128] sm:$0xff]
    %v138 = vld [vmem:[#allocation5 + $0x130] sm:$0xff]
    %v139 = vld [vmem:[#allocation5 + $0x138] sm:$0xff]
    %v140 = vld [vmem:[#allocation5 + $0x140] sm:$0xff]
    %v141 = vld [vmem:[#allocation5 + $0x148] sm:$0xff]
    %v142 = vld [vmem:[#allocation5 + $0x150] sm:$0xff]
    %v143 = vld [vmem:[#allocation5 + $0x158] sm:$0xff]
    %v144 = vld [vmem:[#allocation5 + $0x160] sm:$0xff]
    %v145 = vld [vmem:[#allocation5 + $0x168] sm:$0xff]
    %v146 = vld [vmem:[#allocation5 + $0x170] sm:$0xff]
    %v147 = vld [vmem:[#allocation5 + $0x178] sm:$0xff]
    %v148 = vld [vmem:[#allocation5 + $0x180] sm:$0xff]
    %v149 = vld [vmem:[#allocation5 + $0x188] sm:$0xff]
    %v150 = vld [vmem:[#allocation5 + $0x190] sm:$0xff]
    %v151 = vld [vmem:[#allocation5 + $0x198] sm:$0xff]
    %v152 = vld [vmem:[#allocation5 + $0x1a0] sm:$0xff]
    %v153 = vld [vmem:[#allocation5 + $0x1a8] sm:$0xff]
    %v154 = vld [vmem:[#allocation5 + $0x1b0] sm:$0xff]
    %v155 = vld [vmem:[#allocation5 + $0x1b8] sm:$0xff]
    %v156 = vld [vmem:[#allocation5 + $0x1c0] sm:$0xff]
    %v157 = vld [vmem:[#allocation5 + $0x1c8] sm:$0xff]
    %v158 = vld [vmem:[#allocation5 + $0x1d0] sm:$0xff]
    %v159 = vld [vmem:[#allocation5 + $0x1d8] sm:$0xff]
    %v160 = vld [vmem:[#allocation5 + $0x1e0] sm:$0xff]
    %v161 = vld [vmem:[#allocation5 + $0x1e8] sm:$0xff]
    %v162 = vld [vmem:[#allocation5 + $0x1f0] sm:$0xff]
    %v163 = vld [vmem:[#allocation5 + $0x1f8] sm:$0xff]
    %v164 = vld [vmem:[#allocation5 + $0x200] sm:$0xff]
    %v165 = vld [vmem:[#allocation5 + $0x208] sm:$0xff]
    %v166 = vld [vmem:[#allocation5 + $0x210] sm:$0xff]
    %v167 = vld [vmem:[#allocation5 + $0x218] sm:$0xff]
    %v168 = vld [vmem:[#allocation5 + $0x220] sm:$0xff]
    %v169 = vld [vmem:[#allocation5 + $0x228] sm:$0xff]
    %v170 = vld [vmem:[#allocation5 + $0x230] sm:$0xff]
    %v171 = vld [vmem:[#allocation5 + $0x238] sm:$0xff]
    %v172 = vld [vmem:[#allocation5 + $0x240] sm:$0xff]
    %v173 = vld [vmem:[#allocation5 + $0x248] sm:$0xff]
    %v174 = vld [vmem:[#allocation5 + $0x250] sm:$0xff]
    %v175 = vld [vmem:[#allocation5 + $0x258] sm:$0xff]
    %v176 = vld [vmem:[#allocation5 + $0x260] sm:$0xff]
    %v177 = vld [vmem:[#allocation5 + $0x268] sm:$0xff]
    %v178 = vld [vmem:[#allocation5 + $0x270] sm:$0xff]
    %v179 = vld [vmem:[#allocation5 + $0x278] sm:$0xff]
    %v180 = vld [vmem:[#allocation5 + $0x280] sm:$0xff]
    %v181 = vld [vmem:[#allocation5 + $0x288] sm:$0xff]
    %v182 = vld [vmem:[#allocation5 + $0x290] sm:$0xff]
    %v183 = vld [vmem:[#allocation5 + $0x298] sm:$0xff]
    %v184 = vld [vmem:[#allocation5 + $0x2a0] sm:$0xff]
    %v185 = vld [vmem:[#allocation5 + $0x2a8] sm:$0xff]
    %v186 = vld [vmem:[#allocation5 + $0x2b0] sm:$0xff]
    %v187 = vld [vmem:[#allocation5 + $0x2b8] sm:$0xff]
    %v188 = vld [vmem:[#allocation5 + $0x2c0] sm:$0xff]
    %v189 = vld [vmem:[#allocation5 + $0x2c8] sm:$0xff]
    %v190 = vld [vmem:[#allocation5 + $0x2d0] sm:$0xff]
    %v191 = vld [vmem:[#allocation5 + $0x2d8] sm:$0xff]
    %v192 = vld [vmem:[#allocation5 + $0x2e0] sm:$0xff]
    %v193 = vld [vmem:[#allocation5 + $0x2e8] sm:$0xff]
    %v194 = vld [vmem:[#allocation5 + $0x2f0] sm:$0xff]
    %v195 = vld [vmem:[#allocation5 + $0x2f8] sm:$0xff]
    %v196 = vld [vmem:[#allocation5 + $0x300] sm:$0xff]
    %v197 = vld [vmem:[#allocation5 + $0x308] sm:$0xff]
    %v198 = vld [vmem:[#allocation5 + $0x310] sm:$0xff]
    %v199 = vld [vmem:[#allocation5 + $0x318] sm:$0xff]
    %v200 = vld [vmem:[#allocation5 + $0x320] sm:$0xff]
    %v201 = vld [vmem:[#allocation5 + $0x328] sm:$0xff]
    %v202 = vld [vmem:[#allocation5 + $0x330] sm:$0xff]
    %v203 = vld [vmem:[#allocation5 + $0x338] sm:$0xff]
    %v204 = vld [vmem:[#allocation5 + $0x340] sm:$0xff]
    %v205 = vld [vmem:[#allocation5 + $0x348] sm:$0xff]
    %v206 = vld [vmem:[#allocation5 + $0x350] sm:$0xff]
    %v207 = vld [vmem:[#allocation5 + $0x358] sm:$0xff]
    %v208 = vld [vmem:[#allocation5 + $0x360] sm:$0xff]
    %v209 = vld [vmem:[#allocation5 + $0x368] sm:$0xff]
    %v210 = vld [vmem:[#allocation5 + $0x370] sm:$0xff]
    %v211 = vld [vmem:[#allocation5 + $0x378] sm:$0xff]
    %v212 = vld [vmem:[#allocation5 + $0x380] sm:$0xff]
    %v213 = vld [vmem:[#allocation5 + $0x388] sm:$0xff]
    %v214 = vld [vmem:[#allocation5 + $0x390] sm:$0xff]
    %v215 = vld [vmem:[#allocation5 + $0x398] sm:$0xff]
    %v216 = vld [vmem:[#allocation5 + $0x3a0] sm:$0xff]
    %v217 = vld [vmem:[#allocation5 + $0x3a8] sm:$0xff]
    %v218 = vld [vmem:[#allocation5 + $0x3b0] sm:$0xff]
    %v219 = vld [vmem:[#allocation5 + $0x3b8] sm:$0xff]
    %v220 = vld [vmem:[#allocation5 + $0x3c0] sm:$0xff]
    %v221 = vld [vmem:[#allocation5 + $0x3c8] sm:$0xff]
    %v222 = vld [vmem:[#allocation5 + $0x3d0] sm:$0xff]
    %v223 = vld [vmem:[#allocation5 + $0x3d8] sm:$0xff]
    %v224 = vld [vmem:[#allocation5 + $0x3e0] sm:$0xff]
    %v225 = vld [vmem:[#allocation5 + $0x3e8] sm:$0xff]
    %v226 = vld [vmem:[#allocation5 + $0x3f0] sm:$0xff]
    %v227 = vld [vmem:[#allocation5 + $0x3f8] sm:$0xff]
    %v228 = vld [vmem:[#allocation10] ss:$4 sm:$0xf]
    %v230 = vperm.slane %v228, 0
    %v231 = vperm.slane %v228, 1
    %v232 = vperm.slane %v228, 2
    %v233 = vperm.slane %v228, 3
    %238 = vmatpush.msra.mxu0 %v160
    %239 = vmatpush.msra.mxu0 %v156
    %240 = vmatpush.msra.mxu0 %v152
    %241 = vmatpush.msra.mxu0 %v148
    %242 = vmatpush.msra.mxu0 %v144
    %243 = vmatpush.msra.mxu0 %v140
    %244 = vmatpush.msra.mxu0 %v136
    %245 = vmatpush.msra.mxu0 %v132
    %246 = vmatpush.msra.mxu0 %v128
    %247 = vmatpush.msra.mxu0 %v124
    %248 = vmatpush.msra.mxu0 %v120
    %249 = vmatpush.msra.mxu0 %v116
    %250 = vmatpush.msra.mxu0 %v112
    %251 = vmatpush.msra.mxu0 %v108
    %252 = vmatpush.msra.mxu0 %v104
    %253 = vmatpush.msra.mxu0 %v100
    %254 = vmatmul.f32.gmra.mxu0 %v98
    %v255 = vpop.f32.mrf.mxu0
    %v256 = vadd.f32 %v230, %v255
    %257 = vdwg.mxu0
    %258 = vmatpush.msra.mxu0 %v224
    %259 = vmatpush.msra.mxu0 %v220
    %260 = vmatpush.msra.mxu0 %v216
    %261 = vmatpush.msra.mxu0 %v212
    %262 = vmatpush.msra.mxu0 %v208
    %263 = vmatpush.msra.mxu0 %v204
    %264 = vmatpush.msra.mxu0 %v200
    %265 = vmatpush.msra.mxu0 %v196
    %266 = vmatpush.msra.mxu0 %v192
    %267 = vmatpush.msra.mxu0 %v188
    %268 = vmatpush.msra.mxu0 %v184
    %269 = vmatpush.msra.mxu0 %v180
    %270 = vmatpush.msra.mxu0 %v176
    %271 = vmatpush.msra.mxu0 %v172
    %272 = vmatpush.msra.mxu0 %v168
    %273 = vmatpush.msra.mxu0 %v164
    %274 = vmatmul.f32.gmra.mxu0 %v99
    %v275 = vpop.f32.mrf.mxu0
    %v276 = vadd.f32 %v256, %v275
    %277 = vdwg.mxu0
    %278 = vmatpush.msra.mxu0 %v161
    %279 = vmatpush.msra.mxu0 %v157
    %280 = vmatpush.msra.mxu0 %v153
    %281 = vmatpush.msra.mxu0 %v149
    %282 = vmatpush.msra.mxu0 %v145
    %283 = vmatpush.msra.mxu0 %v141
    %284 = vmatpush.msra.mxu0 %v137
    %285 = vmatpush.msra.mxu0 %v133
    %286 = vmatpush.msra.mxu0 %v129
    %287 = vmatpush.msra.mxu0 %v125
    %288 = vmatpush.msra.mxu0 %v121
    %289 = vmatpush.msra.mxu0 %v117
    %290 = vmatpush.msra.mxu0 %v113
    %291 = vmatpush.msra.mxu0 %v109
    %292 = vmatpush.msra.mxu0 %v105
    %293 = vmatpush.msra.mxu0 %v101
    %294 = vmatmul.f32.gmra.mxu0 %v98
    %v295 = vpop.f32.mrf.mxu0
    %v296 = vadd.f32 %v231, %v295
    %297 = vdwg.mxu0
    %298 = vmatpush.msra.mxu0 %v225
    %299 = vmatpush.msra.mxu0 %v221
    %300 = vmatpush.msra.mxu0 %v217
    %301 = vmatpush.msra.mxu0 %v213
    %302 = vmatpush.msra.mxu0 %v209
    %303 = vmatpush.msra.mxu0 %v205
    %304 = vmatpush.msra.mxu0 %v201
    %305 = vmatpush.msra.mxu0 %v197
    %306 = vmatpush.msra.mxu0 %v193
    %307 = vmatpush.msra.mxu0 %v189
    %308 = vmatpush.msra.mxu0 %v185
    %309 = vmatpush.msra.mxu0 %v181
    %310 = vmatpush.msra.mxu0 %v177
    %311 = vmatpush.msra.mxu0 %v173
    %312 = vmatpush.msra.mxu0 %v169
    %313 = vmatpush.msra.mxu0 %v165
    %314 = vmatmul.f32.gmra.mxu0 %v99
    %v315 = vpop.f32.mrf.mxu0
    %v316 = vadd.f32 %v296, %v315
    %317 = vdwg.mxu0
    %318 = vmatpush.msra.mxu0 %v162
    %319 = vmatpush.msra.mxu0 %v158
    %320 = vmatpush.msra.mxu0 %v154
    %321 = vmatpush.msra.mxu0 %v150
    %322 = vmatpush.msra.mxu0 %v146
    %323 = vmatpush.msra.mxu0 %v142
    %324 = vmatpush.msra.mxu0 %v138
    %325 = vmatpush.msra.mxu0 %v134
    %326 = vmatpush.msra.mxu0 %v130
    %327 = vmatpush.msra.mxu0 %v126
    %328 = vmatpush.msra.mxu0 %v122
    %329 = vmatpush.msra.mxu0 %v118
    %330 = vmatpush.msra.mxu0 %v114
    %331 = vmatpush.msra.mxu0 %v110
    %332 = vmatpush.msra.mxu0 %v106
    %333 = vmatpush.msra.mxu0 %v102
    %334 = vmatmul.f32.gmra.mxu0 %v98
    %v335 = vpop.f32.mrf.mxu0
    %v336 = vadd.f32 %v232, %v335
    %337 = vdwg.mxu0
    %338 = vmatpush.msra.mxu0 %v226
    %339 = vmatpush.msra.mxu0 %v222
    %340 = vmatpush.msra.mxu0 %v218
    %341 = vmatpush.msra.mxu0 %v214
    %342 = vmatpush.msra.mxu0 %v210
    %343 = vmatpush.msra.mxu0 %v206
    %344 = vmatpush.msra.mxu0 %v202
    %345 = vmatpush.msra.mxu0 %v198
    %346 = vmatpush.msra.mxu0 %v194
    %347 = vmatpush.msra.mxu0 %v190
    %348 = vmatpush.msra.mxu0 %v186
    %349 = vmatpush.msra.mxu0 %v182
    %350 = vmatpush.msra.mxu0 %v178
    %351 = vmatpush.msra.mxu0 %v174
    %352 = vmatpush.msra.mxu0 %v170
    %353 = vmatpush.msra.mxu0 %v166
    %354 = vmatmul.f32.gmra.mxu0 %v99
    %v355 = vpop.f32.mrf.mxu0
    %v356 = vadd.f32 %v336, %v355
    %357 = vdwg.mxu0
    %358 = vmatpush.msra.mxu0 %v163
    %359 = vmatpush.msra.mxu0 %v159
    %360 = vmatpush.msra.mxu0 %v155
    %361 = vmatpush.msra.mxu0 %v151
    %362 = vmatpush.msra.mxu0 %v147
    %363 = vmatpush.msra.mxu0 %v143
    %364 = vmatpush.msra.mxu0 %v139
    %365 = vmatpush.msra.mxu0 %v135
    %366 = vmatpush.msra.mxu0 %v131
    %367 = vmatpush.msra.mxu0 %v127
    %368 = vmatpush.msra.mxu0 %v123
    %369 = vmatpush.msra.mxu0 %v119
    %370 = vmatpush.msra.mxu0 %v115
    %371 = vmatpush.msra.mxu0 %v111
    %372 = vmatpush.msra.mxu0 %v107
    %373 = vmatpush.msra.mxu0 %v103
    %374 = vmatmul.f32.gmra.mxu0 %v98
    %v375 = vpop.f32.mrf.mxu0
    %v376 = vadd.f32 %v233, %v375
    %377 = vdwg.mxu0
    %378 = vmatpush.msra.mxu0 %v227
    %379 = vmatpush.msra.mxu0 %v223
    %380 = vmatpush.msra.mxu0 %v219
    %381 = vmatpush.msra.mxu0 %v215
    %382 = vmatpush.msra.mxu0 %v211
    %383 = vmatpush.msra.mxu0 %v207
    %384 = vmatpush.msra.mxu0 %v203
    %385 = vmatpush.msra.mxu0 %v199
    %386 = vmatpush.msra.mxu0 %v195
    %387 = vmatpush.msra.mxu0 %v191
    %388 = vmatpush.msra.mxu0 %v187
    %389 = vmatpush.msra.mxu0 %v183
    %390 = vmatpush.msra.mxu0 %v179
    %391 = vmatpush.msra.mxu0 %v175
    %392 = vmatpush.msra.mxu0 %v171
    %393 = vmatpush.msra.mxu0 %v167
    %394 = vmatmul.f32.gmra.mxu0 %v99
    %v395 = vpop.f32.mrf.mxu0
    %v396 = vadd.f32 %v376, %v395
    %397 = vdwg.mxu0
    %v398 = vmax.f32 %v276, 0.0
    %v399 = vmax.f32 %v316, 0.0
    %v400 = vmax.f32 %v356, 0.0
    %v401 = vmax.f32 %v396, 0.0
    %v402 = vld [vmem:[#allocation7] sm:$0xff]
    %v403 = vld [vmem:[#allocation7 + $0x8] sm:$0xff]
    %v404 = vld [vmem:[#allocation7 + $0x10] sm:$0xff]
    %v405 = vld [vmem:[#allocation7 + $0x18] sm:$0xff]
    %v406 = vld [vmem:[#allocation7 + $0x20] sm:$0xff]
    %v407 = vld [vmem:[#allocation7 + $0x28] sm:$0xff]
    %v408 = vld [vmem:[#allocation7 + $0x30] sm:$0xff]
    %v409 = vld [vmem:[#allocation7 + $0x38] sm:$0xff]
    %v410 = vld [vmem:[#allocation7 + $0x40] sm:$0xff]
    %v411 = vld [vmem:[#allocation7 + $0x48] sm:$0xff]
    %v412 = vld [vmem:[#allocation7 + $0x50] sm:$0xff]
    %v413 = vld [vmem:[#allocation7 + $0x58] sm:$0xff]
    %v414 = vld [vmem:[#allocation7 + $0x60] sm:$0xff]
    %v415 = vld [vmem:[#allocation7 + $0x68] sm:$0xff]
    %v416 = vld [vmem:[#allocation7 + $0x70] sm:$0xff]
    %v417 = vld [vmem:[#allocation7 + $0x78] sm:$0xff]
    %v418 = vld [vmem:[#allocation7 + $0x80] sm:$0xff]
    %v419 = vld [vmem:[#allocation7 + $0x88] sm:$0xff]
    %v420 = vld [vmem:[#allocation7 + $0x90] sm:$0xff]
    %v421 = vld [vmem:[#allocation7 + $0x98] sm:$0xff]
    %v422 = vld [vmem:[#allocation7 + $0xa0] sm:$0xff]
    %v423 = vld [vmem:[#allocation7 + $0xa8] sm:$0xff]
    %v424 = vld [vmem:[#allocation7 + $0xb0] sm:$0xff]
    %v425 = vld [vmem:[#allocation7 + $0xb8] sm:$0xff]
    %v426 = vld [vmem:[#allocation7 + $0xc0] sm:$0xff]
    %v427 = vld [vmem:[#allocation7 + $0xc8] sm:$0xff]
    %v428 = vld [vmem:[#allocation7 + $0xd0] sm:$0xff]
    %v429 = vld [vmem:[#allocation7 + $0xd8] sm:$0xff]
    %v430 = vld [vmem:[#allocation7 + $0xe0] sm:$0xff]
    %v431 = vld [vmem:[#allocation7 + $0xe8] sm:$0xff]
    %v432 = vld [vmem:[#allocation7 + $0xf0] sm:$0xff]
    %v433 = vld [vmem:[#allocation7 + $0xf8] sm:$0xff]
    %v434 = vld [vmem:[#allocation7 + $0x100] sm:$0xff]
    %v435 = vld [vmem:[#allocation7 + $0x108] sm:$0xff]
    %v436 = vld [vmem:[#allocation7 + $0x110] sm:$0xff]
    %v437 = vld [vmem:[#allocation7 + $0x118] sm:$0xff]
    %v438 = vld [vmem:[#allocation7 + $0x120] sm:$0xff]
    %v439 = vld [vmem:[#allocation7 + $0x128] sm:$0xff]
    %v440 = vld [vmem:[#allocation7 + $0x130] sm:$0xff]
    %v441 = vld [vmem:[#allocation7 + $0x138] sm:$0xff]
    %v442 = vld [vmem:[#allocation7 + $0x140] sm:$0xff]
    %v443 = vld [vmem:[#allocation7 + $0x148] sm:$0xff]
    %v444 = vld [vmem:[#allocation7 + $0x150] sm:$0xff]
    %v445 = vld [vmem:[#allocation7 + $0x158] sm:$0xff]
    %v446 = vld [vmem:[#allocation7 + $0x160] sm:$0xff]
    %v447 = vld [vmem:[#allocation7 + $0x168] sm:$0xff]
    %v448 = vld [vmem:[#allocation7 + $0x170] sm:$0xff]
    %v449 = vld [vmem:[#allocation7 + $0x178] sm:$0xff]
    %v450 = vld [vmem:[#allocation7 + $0x180] sm:$0xff]
    %v451 = vld [vmem:[#allocation7 + $0x188] sm:$0xff]
    %v452 = vld [vmem:[#allocation7 + $0x190] sm:$0xff]
    %v453 = vld [vmem:[#allocation7 + $0x198] sm:$0xff]
    %v454 = vld [vmem:[#allocation7 + $0x1a0] sm:$0xff]
    %v455 = vld [vmem:[#allocation7 + $0x1a8] sm:$0xff]
    %v456 = vld [vmem:[#allocation7 + $0x1b0] sm:$0xff]
    %v457 = vld [vmem:[#allocation7 + $0x1b8] sm:$0xff]
    %v458 = vld [vmem:[#allocation7 + $0x1c0] sm:$0xff]
    %v459 = vld [vmem:[#allocation7 + $0x1c8] sm:$0xff]
    %v460 = vld [vmem:[#allocation7 + $0x1d0] sm:$0xff]
    %v461 = vld [vmem:[#allocation7 + $0x1d8] sm:$0xff]
    %v462 = vld [vmem:[#allocation7 + $0x1e0] sm:$0xff]
    %v463 = vld [vmem:[#allocation7 + $0x1e8] sm:$0xff]
    %v464 = vld [vmem:[#allocation7 + $0x1f0] sm:$0xff]
    %v465 = vld [vmem:[#allocation7 + $0x1f8] sm:$0xff]
    %v466 = vld [vmem:[#allocation7 + $0x200] sm:$0xff]
    %v467 = vld [vmem:[#allocation7 + $0x208] sm:$0xff]
    %v468 = vld [vmem:[#allocation7 + $0x210] sm:$0xff]
    %v469 = vld [vmem:[#allocation7 + $0x218] sm:$0xff]
    %v470 = vld [vmem:[#allocation7 + $0x220] sm:$0xff]
    %v471 = vld [vmem:[#allocation7 + $0x228] sm:$0xff]
    %v472 = vld [vmem:[#allocation7 + $0x230] sm:$0xff]
    %v473 = vld [vmem:[#allocation7 + $0x238] sm:$0xff]
    %v474 = vld [vmem:[#allocation7 + $0x240] sm:$0xff]
    %v475 = vld [vmem:[#allocation7 + $0x248] sm:$0xff]
    %v476 = vld [vmem:[#allocation7 + $0x250] sm:$0xff]
    %v477 = vld [vmem:[#allocation7 + $0x258] sm:$0xff]
    %v478 = vld [vmem:[#allocation7 + $0x260] sm:$0xff]
    %v479 = vld [vmem:[#allocation7 + $0x268] sm:$0xff]
    %v480 = vld [vmem:[#allocation7 + $0x270] sm:$0xff]
    %v481 = vld [vmem:[#allocation7 + $0x278] sm:$0xff]
    %v482 = vld [vmem:[#allocation7 + $0x280] sm:$0xff]
    %v483 = vld [vmem:[#allocation7 + $0x288] sm:$0xff]
    %v484 = vld [vmem:[#allocation7 + $0x290] sm:$0xff]
    %v485 = vld [vmem:[#allocation7 + $0x298] sm:$0xff]
    %v486 = vld [vmem:[#allocation7 + $0x2a0] sm:$0xff]
    %v487 = vld [vmem:[#allocation7 + $0x2a8] sm:$0xff]
    %v488 = vld [vmem:[#allocation7 + $0x2b0] sm:$0xff]
    %v489 = vld [vmem:[#allocation7 + $0x2b8] sm:$0xff]
    %v490 = vld [vmem:[#allocation7 + $0x2c0] sm:$0xff]
    %v491 = vld [vmem:[#allocation7 + $0x2c8] sm:$0xff]
    %v492 = vld [vmem:[#allocation7 + $0x2d0] sm:$0xff]
    %v493 = vld [vmem:[#allocation7 + $0x2d8] sm:$0xff]
    %v494 = vld [vmem:[#allocation7 + $0x2e0] sm:$0xff]
    %v495 = vld [vmem:[#allocation7 + $0x2e8] sm:$0xff]
    %v496 = vld [vmem:[#allocation7 + $0x2f0] sm:$0xff]
    %v497 = vld [vmem:[#allocation7 + $0x2f8] sm:$0xff]
    %v498 = vld [vmem:[#allocation7 + $0x300] sm:$0xff]
    %v499 = vld [vmem:[#allocation7 + $0x308] sm:$0xff]
    %v500 = vld [vmem:[#allocation7 + $0x310] sm:$0xff]
    %v501 = vld [vmem:[#allocation7 + $0x318] sm:$0xff]
    %v502 = vld [vmem:[#allocation7 + $0x320] sm:$0xff]
    %v503 = vld [vmem:[#allocation7 + $0x328] sm:$0xff]
    %v504 = vld [vmem:[#allocation7 + $0x330] sm:$0xff]
    %v505 = vld [vmem:[#allocation7 + $0x338] sm:$0xff]
    %v506 = vld [vmem:[#allocation7 + $0x340] sm:$0xff]
    %v507 = vld [vmem:[#allocation7 + $0x348] sm:$0xff]
    %v508 = vld [vmem:[#allocation7 + $0x350] sm:$0xff]
    %v509 = vld [vmem:[#allocation7 + $0x358] sm:$0xff]
    %v510 = vld [vmem:[#allocation7 + $0x360] sm:$0xff]
    %v511 = vld [vmem:[#allocation7 + $0x368] sm:$0xff]
    %v512 = vld [vmem:[#allocation7 + $0x370] sm:$0xff]
    %v513 = vld [vmem:[#allocation7 + $0x378] sm:$0xff]
    %v514 = vld [vmem:[#allocation7 + $0x380] sm:$0xff]
    %v515 = vld [vmem:[#allocation7 + $0x388] sm:$0xff]
    %v516 = vld [vmem:[#allocation7 + $0x390] sm:$0xff]
    %v517 = vld [vmem:[#allocation7 + $0x398] sm:$0xff]
    %v518 = vld [vmem:[#allocation7 + $0x3a0] sm:$0xff]
    %v519 = vld [vmem:[#allocation7 + $0x3a8] sm:$0xff]
    %v520 = vld [vmem:[#allocation7 + $0x3b0] sm:$0xff]
    %v521 = vld [vmem:[#allocation7 + $0x3b8] sm:$0xff]
    %v522 = vld [vmem:[#allocation7 + $0x3c0] sm:$0xff]
    %v523 = vld [vmem:[#allocation7 + $0x3c8] sm:$0xff]
    %v524 = vld [vmem:[#allocation7 + $0x3d0] sm:$0xff]
    %v525 = vld [vmem:[#allocation7 + $0x3d8] sm:$0xff]
    %v526 = vld [vmem:[#allocation7 + $0x3e0] sm:$0xff]
    %v527 = vld [vmem:[#allocation7 + $0x3e8] sm:$0xff]
    %v528 = vld [vmem:[#allocation7 + $0x3f0] sm:$0xff]
    %v529 = vld [vmem:[#allocation7 + $0x3f8] sm:$0xff]
    %s530 = scalar_lea.vmem [#allocation10], 1
    %v531 = vld [vmem:[%s530] ss:$4 sm:$0x3]
    %v533 = vperm.slane %v531, 0
    %v534 = vperm.slane %v531, 1
    %537 = vmatpush.msra.mxu0 %v432
    %538 = vmatpush.msra.mxu0 %v430
    %539 = vmatpush.msra.mxu0 %v428
    %540 = vmatpush.msra.mxu0 %v426
    %541 = vmatpush.msra.mxu0 %v424
    %542 = vmatpush.msra.mxu0 %v422
    %543 = vmatpush.msra.mxu0 %v420
    %544 = vmatpush.msra.mxu0 %v418
    %545 = vmatpush.msra.mxu0 %v416
    %546 = vmatpush.msra.mxu0 %v414
    %547 = vmatpush.msra.mxu0 %v412
    %548 = vmatpush.msra.mxu0 %v410
    %549 = vmatpush.msra.mxu0 %v408
    %550 = vmatpush.msra.mxu0 %v406
    %551 = vmatpush.msra.mxu0 %v404
    %552 = vmatpush.msra.mxu0 %v402
    %553 = vmatmul.f32.gmra.mxu0 %v398
    %v554 = vpop.f32.mrf.mxu0
    %v555 = vadd.f32 %v533, %v554
    %556 = vdwg.mxu0
    %557 = vmatpush.msra.mxu0 %v464
    %558 = vmatpush.msra.mxu0 %v462
    %559 = vmatpush.msra.mxu0 %v460
    %560 = vmatpush.msra.mxu0 %v458
    %561 = vmatpush.msra.mxu0 %v456
    %562 = vmatpush.msra.mxu0 %v454
    %563 = vmatpush.msra.mxu0 %v452
    %564 = vmatpush.msra.mxu0 %v450
    %565 = vmatpush.msra.mxu0 %v448
    %566 = vmatpush.msra.mxu0 %v446
    %567 = vmatpush.msra.mxu0 %v444
    %568 = vmatpush.msra.mxu0 %v442
    %569 = vmatpush.msra.mxu0 %v440
    %570 = vmatpush.msra.mxu0 %v438
    %571 = vmatpush.msra.mxu0 %v436
    %572 = vmatpush.msra.mxu0 %v434
    %573 = vmatmul.f32.gmra.mxu0 %v399
    %v574 = vpop.f32.mrf.mxu0
    %v575 = vadd.f32 %v555, %v574
    %576 = vdwg.mxu0
    %577 = vmatpush.msra.mxu0 %v496
    %578 = vmatpush.msra.mxu0 %v494
    %579 = vmatpush.msra.mxu0 %v492
    %580 = vmatpush.msra.mxu0 %v490
    %581 = vmatpush.msra.mxu0 %v488
    %582 = vmatpush.msra.mxu0 %v486
    %583 = vmatpush.msra.mxu0 %v484
    %584 = vmatpush.msra.mxu0 %v482
    %585 = vmatpush.msra.mxu0 %v480
    %586 = vmatpush.msra.mxu0 %v478
    %587 = vmatpush.msra.mxu0 %v476
    %588 = vmatpush.msra.mxu0 %v474
    %589 = vmatpush.msra.mxu0 %v472
    %590 = vmatpush.msra.mxu0 %v470
    %591 = vmatpush.msra.mxu0 %v468
    %592 = vmatpush.msra.mxu0 %v466
    %593 = vmatmul.f32.gmra.mxu0 %v400
    %v594 = vpop.f32.mrf.mxu0
    %v595 = vadd.f32 %v575, %v594
    %596 = vdwg.mxu0
    %597 = vmatpush.msra.mxu0 %v528
    %598 = vmatpush.msra.mxu0 %v526
    %599 = vmatpush.msra.mxu0 %v524
    %600 = vmatpush.msra.mxu0 %v522
    %601 = vmatpush.msra.mxu0 %v520
    %602 = vmatpush.msra.mxu0 %v518
    %603 = vmatpush.msra.mxu0 %v516
    %604 = vmatpush.msra.mxu0 %v514
    %605 = vmatpush.msra.mxu0 %v512
    %606 = vmatpush.msra.mxu0 %v510
    %607 = vmatpush.msra.mxu0 %v508
    %608 = vmatpush.msra.mxu0 %v506
    %609 = vmatpush.msra.mxu0 %v504
    %610 = vmatpush.msra.mxu0 %v502
    %611 = vmatpush.msra.mxu0 %v500
    %612 = vmatpush.msra.mxu0 %v498
    %613 = vmatmul.f32.gmra.mxu0 %v401
    %v614 = vpop.f32.mrf.mxu0
    %v615 = vadd.f32 %v595, %v614
    %616 = vdwg.mxu0
    %617 = vmatpush.msra.mxu0 %v433
    %618 = vmatpush.msra.mxu0 %v431
    %619 = vmatpush.msra.mxu0 %v429
    %620 = vmatpush.msra.mxu0 %v427
    %621 = vmatpush.msra.mxu0 %v425
    %622 = vmatpush.msra.mxu0 %v423
    %623 = vmatpush.msra.mxu0 %v421
    %624 = vmatpush.msra.mxu0 %v419
    %625 = vmatpush.msra.mxu0 %v417
    %626 = vmatpush.msra.mxu0 %v415
    %627 = vmatpush.msra.mxu0 %v413
    %628 = vmatpush.msra.mxu0 %v411
    %629 = vmatpush.msra.mxu0 %v409
    %630 = vmatpush.msra.mxu0 %v407
    %631 = vmatpush.msra.mxu0 %v405
    %632 = vmatpush.msra.mxu0 %v403
    %633 = vmatmul.f32.gmra.mxu0 %v398
    %v634 = vpop.f32.mrf.mxu0
    %v635 = vadd.f32 %v534, %v634
    %636 = vdwg.mxu0
    %637 = vmatpush.msra.mxu0 %v465
    %638 = vmatpush.msra.mxu0 %v463
    %639 = vmatpush.msra.mxu0 %v461
    %640 = vmatpush.msra.mxu0 %v459
    %641 = vmatpush.msra.mxu0 %v457
    %642 = vmatpush.msra.mxu0 %v455
    %643 = vmatpush.msra.mxu0 %v453
    %644 = vmatpush.msra.mxu0 %v451
    %645 = vmatpush.msra.mxu0 %v449
    %646 = vmatpush.msra.mxu0 %v447
    %647 = vmatpush.msra.mxu0 %v445
    %648 = vmatpush.msra.mxu0 %v443
    %649 = vmatpush.msra.mxu0 %v441
    %650 = vmatpush.msra.mxu0 %v439
    %651 = vmatpush.msra.mxu0 %v437
    %652 = vmatpush.msra.mxu0 %v435
    %653 = vmatmul.f32.gmra.mxu0 %v399
    %v654 = vpop.f32.mrf.mxu0
    %v655 = vadd.f32 %v635, %v654
    %656 = vdwg.mxu0
    %657 = vmatpush.msra.mxu0 %v497
    %658 = vmatpush.msra.mxu0 %v495
    %659 = vmatpush.msra.mxu0 %v493
    %660 = vmatpush.msra.mxu0 %v491
    %661 = vmatpush.msra.mxu0 %v489
    %662 = vmatpush.msra.mxu0 %v487
    %663 = vmatpush.msra.mxu0 %v485
    %664 = vmatpush.msra.mxu0 %v483
    %665 = vmatpush.msra.mxu0 %v481
    %666 = vmatpush.msra.mxu0 %v479
    %667 = vmatpush.msra.mxu0 %v477
    %668 = vmatpush.msra.mxu0 %v475
    %669 = vmatpush.msra.mxu0 %v473
    %670 = vmatpush.msra.mxu0 %v471
    %671 = vmatpush.msra.mxu0 %v469
    %672 = vmatpush.msra.mxu0 %v467
    %673 = vmatmul.f32.gmra.mxu0 %v400
    %v674 = vpop.f32.mrf.mxu0
    %v675 = vadd.f32 %v655, %v674
    %676 = vdwg.mxu0
    %677 = vmatpush.msra.mxu0 %v529
    %678 = vmatpush.msra.mxu0 %v527
    %679 = vmatpush.msra.mxu0 %v525
    %680 = vmatpush.msra.mxu0 %v523
    %681 = vmatpush.msra.mxu0 %v521
    %682 = vmatpush.msra.mxu0 %v519
    %683 = vmatpush.msra.mxu0 %v517
    %684 = vmatpush.msra.mxu0 %v515
    %685 = vmatpush.msra.mxu0 %v513
    %686 = vmatpush.msra.mxu0 %v511
    %687 = vmatpush.msra.mxu0 %v509
    %688 = vmatpush.msra.mxu0 %v507
    %689 = vmatpush.msra.mxu0 %v505
    %690 = vmatpush.msra.mxu0 %v503
    %691 = vmatpush.msra.mxu0 %v501
    %692 = vmatpush.msra.mxu0 %v499
    %693 = vmatmul.f32.gmra.mxu0 %v401
    %v694 = vpop.f32.mrf.mxu0
    %v695 = vadd.f32 %v675, %v694
    %696 = vdwg.mxu0
    %v697 = vmax.f32 %v615, 0.0
    %v698 = vmax.f32 %v695, 0.0
    %v699 = vld [vmem:[#allocation8] sm:$0xff]
    %v700 = vld [vmem:[#allocation8 + $0x8] sm:$0xff]
    %v701 = vld [vmem:[#allocation8 + $0x10] sm:$0xff]
    %v702 = vld [vmem:[#allocation8 + $0x18] sm:$0xff]
    %v703 = vld [vmem:[#allocation8 + $0x20] sm:$0xff]
    %v704 = vld [vmem:[#allocation8 + $0x28] sm:$0xff]
    %v705 = vld [vmem:[#allocation8 + $0x30] sm:$0xff]
    %v706 = vld [vmem:[#allocation8 + $0x38] sm:$0xff]
    %v707 = vld [vmem:[#allocation8 + $0x40] sm:$0xff]
    %v708 = vld [vmem:[#allocation8 + $0x48] sm:$0xff]
    %v709 = vld [vmem:[#allocation8 + $0x50] sm:$0xff]
    %v710 = vld [vmem:[#allocation8 + $0x58] sm:$0xff]
    %v711 = vld [vmem:[#allocation8 + $0x60] sm:$0xff]
    %v712 = vld [vmem:[#allocation8 + $0x68] sm:$0xff]
    %v713 = vld [vmem:[#allocation8 + $0x70] sm:$0xff]
    %v714 = vld [vmem:[#allocation8 + $0x78] sm:$0xff]
    %v715 = vld [vmem:[#allocation8 + $0x80] sm:$0xff]
    %v716 = vld [vmem:[#allocation8 + $0x88] sm:$0xff]
    %v717 = vld [vmem:[#allocation8 + $0x90] sm:$0xff]
    %v718 = vld [vmem:[#allocation8 + $0x98] sm:$0xff]
    %v719 = vld [vmem:[#allocation8 + $0xa0] sm:$0xff]
    %v720 = vld [vmem:[#allocation8 + $0xa8] sm:$0xff]
    %v721 = vld [vmem:[#allocation8 + $0xb0] sm:$0xff]
    %v722 = vld [vmem:[#allocation8 + $0xb8] sm:$0xff]
    %v723 = vld [vmem:[#allocation8 + $0xc0] sm:$0xff]
    %v724 = vld [vmem:[#allocation8 + $0xc8] sm:$0xff]
    %v725 = vld [vmem:[#allocation8 + $0xd0] sm:$0xff]
    %v726 = vld [vmem:[#allocation8 + $0xd8] sm:$0xff]
    %v727 = vld [vmem:[#allocation8 + $0xe0] sm:$0xff]
    %v728 = vld [vmem:[#allocation8 + $0xe8] sm:$0xff]
    %v729 = vld [vmem:[#allocation8 + $0xf0] sm:$0xff]
    %v730 = vld [vmem:[#allocation8 + $0xf8] sm:$0xff]
    %v731 = vld [vmem:[#allocation8 + $0x100] sm:$0xff]
    %v732 = vld [vmem:[#allocation8 + $0x108] sm:$0xff]
    %v733 = vld [vmem:[#allocation8 + $0x110] sm:$0xff]
    %v734 = vld [vmem:[#allocation8 + $0x118] sm:$0xff]
    %v735 = vld [vmem:[#allocation8 + $0x120] sm:$0xff]
    %v736 = vld [vmem:[#allocation8 + $0x128] sm:$0xff]
    %v737 = vld [vmem:[#allocation8 + $0x130] sm:$0xff]
    %v738 = vld [vmem:[#allocation8 + $0x138] sm:$0xff]
    %v739 = vld [vmem:[#allocation8 + $0x140] sm:$0xff]
    %v740 = vld [vmem:[#allocation8 + $0x148] sm:$0xff]
    %v741 = vld [vmem:[#allocation8 + $0x150] sm:$0xff]
    %v742 = vld [vmem:[#allocation8 + $0x158] sm:$0xff]
    %v743 = vld [vmem:[#allocation8 + $0x160] sm:$0xff]
    %v744 = vld [vmem:[#allocation8 + $0x168] sm:$0xff]
    %v745 = vld [vmem:[#allocation8 + $0x170] sm:$0xff]
    %v746 = vld [vmem:[#allocation8 + $0x178] sm:$0xff]
    %v747 = vld [vmem:[#allocation8 + $0x180] sm:$0xff]
    %v748 = vld [vmem:[#allocation8 + $0x188] sm:$0xff]
    %v749 = vld [vmem:[#allocation8 + $0x190] sm:$0xff]
    %v750 = vld [vmem:[#allocation8 + $0x198] sm:$0xff]
    %v751 = vld [vmem:[#allocation8 + $0x1a0] sm:$0xff]
    %v752 = vld [vmem:[#allocation8 + $0x1a8] sm:$0xff]
    %v753 = vld [vmem:[#allocation8 + $0x1b0] sm:$0xff]
    %v754 = vld [vmem:[#allocation8 + $0x1b8] sm:$0xff]
    %v755 = vld [vmem:[#allocation8 + $0x1c0] sm:$0xff]
    %v756 = vld [vmem:[#allocation8 + $0x1c8] sm:$0xff]
    %v757 = vld [vmem:[#allocation8 + $0x1d0] sm:$0xff]
    %v758 = vld [vmem:[#allocation8 + $0x1d8] sm:$0xff]
    %v759 = vld [vmem:[#allocation8 + $0x1e0] sm:$0xff]
    %v760 = vld [vmem:[#allocation8 + $0x1e8] sm:$0xff]
    %v761 = vld [vmem:[#allocation8 + $0x1f0] sm:$0xff]
    %v762 = vld [vmem:[#allocation8 + $0x1f8] sm:$0xff]
    %s763 = scalar_lea.vmem [#allocation10], 2
    %v764 = vld [vmem:[%s763] ss:$4 sm:$0x3]
    %v766 = vperm.slane %v764, 0
    %v767 = vperm.slane %v764, 1
    %770 = vmatpush.msra.mxu0 %v729
    %771 = vmatpush.msra.mxu0 %v727
    %772 = vmatpush.msra.mxu0 %v725
    %773 = vmatpush.msra.mxu0 %v723
    %774 = vmatpush.msra.mxu0 %v721
    %775 = vmatpush.msra.mxu0 %v719
    %776 = vmatpush.msra.mxu0 %v717
    %777 = vmatpush.msra.mxu0 %v715
    %778 = vmatpush.msra.mxu0 %v713
    %779 = vmatpush.msra.mxu0 %v711
    %780 = vmatpush.msra.mxu0 %v709
    %781 = vmatpush.msra.mxu0 %v707
    %782 = vmatpush.msra.mxu0 %v705
    %783 = vmatpush.msra.mxu0 %v703
    %784 = vmatpush.msra.mxu0 %v701
    %785 = vmatpush.msra.mxu0 %v699
    %786 = vmatmul.f32.gmra.mxu0 %v697
    %v787 = vpop.f32.mrf.mxu0
    %v788 = vadd.f32 %v766, %v787
    %789 = vdwg.mxu0
    %790 = vmatpush.msra.mxu0 %v761
    %791 = vmatpush.msra.mxu0 %v759
    %792 = vmatpush.msra.mxu0 %v757
    %793 = vmatpush.msra.mxu0 %v755
    %794 = vmatpush.msra.mxu0 %v753
    %795 = vmatpush.msra.mxu0 %v751
    %796 = vmatpush.msra.mxu0 %v749
    %797 = vmatpush.msra.mxu0 %v747
    %798 = vmatpush.msra.mxu0 %v745
    %799 = vmatpush.msra.mxu0 %v743
    %800 = vmatpush.msra.mxu0 %v741
    %801 = vmatpush.msra.mxu0 %v739
    %802 = vmatpush.msra.mxu0 %v737
    %803 = vmatpush.msra.mxu0 %v735
    %804 = vmatpush.msra.mxu0 %v733
    %805 = vmatpush.msra.mxu0 %v731
    %806 = vmatmul.f32.gmra.mxu0 %v698
    %v807 = vpop.f32.mrf.mxu0
    %v808 = vadd.f32 %v788, %v807
    %809 = vdwg.mxu0
    %810 = vmatpush.msra.mxu0 %v730
    %811 = vmatpush.msra.mxu0 %v728
    %812 = vmatpush.msra.mxu0 %v726
    %813 = vmatpush.msra.mxu0 %v724
    %814 = vmatpush.msra.mxu0 %v722
    %815 = vmatpush.msra.mxu0 %v720
    %816 = vmatpush.msra.mxu0 %v718
    %817 = vmatpush.msra.mxu0 %v716
    %818 = vmatpush.msra.mxu0 %v714
    %819 = vmatpush.msra.mxu0 %v712
    %820 = vmatpush.msra.mxu0 %v710
    %821 = vmatpush.msra.mxu0 %v708
    %822 = vmatpush.msra.mxu0 %v706
    %823 = vmatpush.msra.mxu0 %v704
    %824 = vmatpush.msra.mxu0 %v702
    %825 = vmatpush.msra.mxu0 %v700
    %826 = vmatmul.f32.gmra.mxu0 %v697
    %v827 = vpop.f32.mrf.mxu0
    %v828 = vadd.f32 %v767, %v827
    %829 = vdwg.mxu0
    %830 = vmatpush.msra.mxu0 %v762
    %831 = vmatpush.msra.mxu0 %v760
    %832 = vmatpush.msra.mxu0 %v758
    %833 = vmatpush.msra.mxu0 %v756
    %834 = vmatpush.msra.mxu0 %v754
    %835 = vmatpush.msra.mxu0 %v752
    %836 = vmatpush.msra.mxu0 %v750
    %837 = vmatpush.msra.mxu0 %v748
    %838 = vmatpush.msra.mxu0 %v746
    %839 = vmatpush.msra.mxu0 %v744
    %840 = vmatpush.msra.mxu0 %v742
    %841 = vmatpush.msra.mxu0 %v740
    %842 = vmatpush.msra.mxu0 %v738
    %843 = vmatpush.msra.mxu0 %v736
    %844 = vmatpush.msra.mxu0 %v734
    %845 = vmatpush.msra.mxu0 %v732
    %846 = vmatmul.f32.gmra.mxu0 %v698
    %v847 = vpop.f32.mrf.mxu0
    %v848 = vadd.f32 %v828, %v847
    %849 = vdwg.mxu0
    %850 = vst [vmem:[#allocation11] sm:$0xff] %v808
    %851 = vst [vmem:[#allocation12] sm:$0xff] %v848
    // Predicated region
    $region42: #{tpu_custom_call.1} parent=1 // pred_check
      _
    $region43: #{tpu_custom_call.1} parent=1 // pred_check_branch
      %853 = sbr.rel (0) target = $region45
    $region44: #{tpu_custom_call.1} parent=1 // pred_region
      %855 = vsyncadd [#allocation4], 0
      %s857 = sshll.u32 [#allocation11], 4
      %s858 = int_to_ptr.vmem [resolvable:$true] %s857
      %s859 = sshll.u32 %s5, 4
      %s860 = int_to_ptr.hbm [resolvable:$true] %s859
      %862 = dma.vmem_to_hbm [thread:$0]  %s858, 128, %s860, [#allocation4]
    $region45: #{tpu_custom_call.1} parent=1 // pred_fallthru
      _
    // Predicated region
    $region46: #{tpu_custom_call.1} parent=1 // pred_check
      _
    $region47: #{tpu_custom_call.1} parent=1 // pred_check_branch
      %864 = sbr.rel (0) target = $region49
    $region48: #{tpu_custom_call.1} parent=1 // pred_region
      %866 = vsyncadd [#allocation13], 0
      %s868 = sshll.u32 [#allocation12], 4
      %s869 = int_to_ptr.vmem [resolvable:$true] %s868
      %s870 = sshll.u32 %s6, 4
      %s871 = int_to_ptr.hbm [resolvable:$true] %s870
      %873 = dma.vmem_to_hbm [thread:$0]  %s869, 128, %s871, [#allocation13]
    $region49: #{tpu_custom_call.1} parent=1 // pred_fallthru
      _
    // Predicated region
    $region50: #{tpu_custom_call.1} parent=1 // pred_check
      _
    $region51: #{tpu_custom_call.1} parent=1 // pred_check_branch
      %875 = sbr.rel (0) target = $region53
    $region52: #{tpu_custom_call.1} parent=1 // pred_region
      %877 = dma.done [#allocation4], 128
    $region53: #{tpu_custom_call.1} parent=1 // pred_fallthru
      _
    // Predicated region
    $region54: #{tpu_custom_call.1} parent=1 // pred_check
      _
    $region55: #{tpu_custom_call.1} parent=1 // pred_check_branch
      %879 = sbr.rel (0) target = $region57
    $region56: #{tpu_custom_call.1} parent=1 // pred_region
      %881 = dma.done [#allocation13], 128
    $region57: #{tpu_custom_call.1} parent=1 // pred_fallthru
      _
    %882 = vsyncpa [#allocation3], 1
    %883 = vsyncpa [#allocation6], 1
    %884 = vsyncpa [#allocation9], 1
    %885 = vsyncpa [#allocation4], 1
    %886 = vsyncpa [#allocation13], 1

</llo_original>
